<compile_context>
chip_gen: v6e
topology: v6e:2x2x1
jax: 0.10.0
libtpu: 0.0.40
codegen_flags: <defaults>
</compile_context>

<pallas_src>
import functools

import jax
import jax.numpy as jnp
from jax.experimental import pallas as pl
from jax.experimental.pallas import tpu as pltpu


# ---------------------------------------------------------------------------
# 1) General concat kernel (blocked class axis, single fused store)
# ---------------------------------------------------------------------------
def _concat_kernel(prefix_ref, ctx_ref, suffix_ref, out_ref):
    # prefix_ref : (B, 1, dim)        per-class SOS embeddings (model dtype)
    # ctx_ref    : (n_ctx, dim)       shared learnable context (may be f32)
    # suffix_ref : (B, n_suffix, dim) per-class suffix embeddings (model dtype)
    # out_ref    : (B, seq, dim)
    b, _, dim = out_ref.shape
    n_ctx = ctx_ref.shape[0]
    # Cast ctx to the output dtype once, broadcast over the class-block axis
    # (hoisted — done once per tile, not per row), then emit a single
    # full-block store: no sublane-unaligned masked stores.
    ctx_b = jnp.broadcast_to(
        ctx_ref[...].astype(out_ref.dtype)[None, :, :], (b, n_ctx, dim)
    )
    out_ref[...] = jnp.concatenate(
        [prefix_ref[...].astype(out_ref.dtype),
         ctx_b,
         suffix_ref[...].astype(out_ref.dtype)],
        axis=1,
    )


def prompt_learner_forward(token_prefix, ctx, token_suffix, *, block_cls=None):
    """prompts = concat([prefix, broadcast(ctx), suffix], axis=1).

    token_prefix: (n_cls, 1, dim)        model dtype
    ctx:          (n_ctx, dim)           learnable parameter (any float dtype)
    token_suffix: (n_cls, n_suffix, dim) model dtype
    returns:      (n_cls, 1+n_ctx+n_suffix, dim) in token_prefix.dtype
    """
    n_cls, one, dim = token_prefix.shape
    assert one == 1
    n_ctx, dim_c = ctx.shape
    assert dim_c == dim
    n_suffix = token_suffix.shape[1]
    seq = 1 + n_ctx + n_suffix
    out_dtype = token_prefix.dtype

    if block_cls is None:
        # 64 is VMEM-safe on all generations (incl. v7x's 64 MiB VMEM) for
        # CLIP-scale seq/dim; on v5e/v6e 128-256 gets closer to HBM roofline.
        block_cls = 64
    block_cls = min(block_cls, n_cls)

    grid = (pl.cdiv(n_cls, block_cls),)

    return pl.pallas_call(
        _concat_kernel,
        out_shape=jax.ShapeDtypeStruct((n_cls, seq, dim), out_dtype),
        grid_spec=pltpu.PrefetchScalarGridSpec(
            num_scalar_prefetch=0,
            grid=grid,
            in_specs=[
                # per-class-block prefix rows
                pl.BlockSpec((block_cls, 1, dim), lambda i: (i, 0, 0)),
                # shared ctx parameter — same (full) block for every step
                pl.BlockSpec((n_ctx, dim), lambda i: (0, 0)),
                # per-class-block suffix rows
                pl.BlockSpec((block_cls, n_suffix, dim), lambda i: (i, 0, 0)),
            ],
            out_specs=pl.BlockSpec((block_cls, seq, dim), lambda i: (i, 0, 0)),
        ),
        compiler_params=pltpu.CompilerParams(
            dimension_semantics=("parallel",),
        ),
    )(token_prefix, ctx, token_suffix)


# ---------------------------------------------------------------------------
# 2) Fast path: alias a precomputed base-prompts buffer, write only ctx rows
# ---------------------------------------------------------------------------
def build_base_prompts(token_prefix, token_suffix, n_ctx):
    """Init-time precompute (frozen buffers): prefix + zero ctx rows + suffix."""
    n_cls, _, dim = token_prefix.shape
    zeros = jnp.zeros((n_cls, n_ctx, dim), token_prefix.dtype)
    return jnp.concatenate([token_prefix, zeros, token_suffix], axis=1)


def _make_ctx_scatter_kernel(n_cls, n_ctx, block_cls):
    def kernel(ctx_ref, base_ref, out_ref, ctx_tile):
        # ctx_ref  : (n_ctx, dim) in VMEM
        # base_ref : (n_cls, seq, dim) in HBM, aliased to out_ref (unused here)
        # out_ref  : (n_cls, seq, dim) in HBM
        # ctx_tile : (block_cls, n_ctx, dim) VMEM scratch in the output dtype
        del base_ref  # same HBM buffer as out_ref (input_output_aliases)
        i = pl.program_id(0)
        ctx_tile[...] = jnp.broadcast_to(
            ctx_ref[...].astype(ctx_tile.dtype)[None, :, :], ctx_tile.shape
        )
        # Clamp the last block so a ragged n_cls just re-writes a few rows of
        # the previous block with identical ctx values (always in-bounds).
        start = jnp.minimum(i * block_cls, n_cls - block_cls)
        pltpu.sync_copy(
            ctx_tile,
            out_ref.at[pl.ds(start, block_cls), pl.ds(1, n_ctx), :],
        )

    return kernel


def prompt_learner_forward_ctx_only(base_prompts, ctx, *, block_cls=None):
    """Forward that only writes the n_ctx learnable rows per class.

    base_prompts: (n_cls, seq, dim) precomputed once (prefix/suffix in place).
    ctx:          (n_ctx, dim) learnable parameter.
    returns:      (n_cls, seq, dim) — base_prompts with rows [1, 1+n_ctx) replaced.
    """
    n_cls, seq, dim = base_prompts.shape
    n_ctx = ctx.shape[0]
    out_dtype = base_prompts.dtype

    if block_cls is None:
        block_cls = 256  # tiny VMEM footprint: block_cls * n_ctx * dim * itemsize
    block_cls = min(block_cls, n_cls)
    grid = (pl.cdiv(n_cls, block_cls),)

    kernel = _make_ctx_scatter_kernel(n_cls, n_ctx, block_cls)

    return pl.pallas_call(
        kernel,
        out_shape=jax.ShapeDtypeStruct((n_cls, seq, dim), out_dtype),
        grid_spec=pltpu.PrefetchScalarGridSpec(
            num_scalar_prefetch=0,
            grid=grid,
            in_specs=[
                pl.BlockSpec((n_ctx, dim), lambda i: (0, 0)),  # ctx -> VMEM
                pl.BlockSpec(memory_space=pl.ANY),             # base, stays in HBM
            ],
            out_specs=pl.BlockSpec(memory_space=pl.ANY),       # written via DMA only
            scratch_shapes=[pltpu.VMEM((block_cls, n_ctx, dim), out_dtype)],
        ),
        input_output_aliases={1: 0},  # base_prompts buffer IS the output buffer
        compiler_params=pltpu.CompilerParams(
            dimension_semantics=("arbitrary",),
        ),
    )(ctx, base_prompts)


# ---------------------------------------------------------------------------
# Demo / correctness check
# ---------------------------------------------------------------------------
if __name__ == "__main__":
    # Small deterministic setup consistent with the module
    # (real CLIP: n_cls up to ~1000, seq=77, dim=512, fp16/bf16).
    n_cls = 12
    n_ctx = 4                     # 'a photo of a' -> 4 learnable context tokens
    seq = 16                      # total tokenized prompt length
    dim = 128                     # token-embedding dim (lane-aligned)
    n_suffix = seq - 1 - n_ctx
    model_dtype = jnp.bfloat16    # clip_model.dtype

    key = jax.random.PRNGKey(0)
    k_emb, k_ctx = jax.random.split(key)

    # Stand-in for clip_model.token_embedding(tokenized_prompts):
    embedding = jax.random.normal(k_emb, (n_cls, seq, dim), dtype=jnp.float32)
    token_prefix = embedding[:, :1, :].astype(model_dtype)          # (n_cls, 1, dim)
    token_suffix = embedding[:, 1 + n_ctx:, :].astype(model_dtype)  # (n_cls, n_suffix, dim)

    # Learnable ctx parameter kept in float32 (as a real training param would be).
    ctx = jax.random.normal(k_ctx, (n_ctx, dim), dtype=jnp.float32)

    # Pure-JAX reference.
    ctx_b = jnp.broadcast_to(ctx.astype(model_dtype)[None, :, :], (n_cls, n_ctx, dim))
    ref = jnp.concatenate([token_prefix, ctx_b, token_suffix], axis=1)

    def check(name, got):
        assert got.shape == (n_cls, seq, dim), (name, got.shape)
        assert got.dtype == model_dtype, (name, got.dtype)
        ok = jnp.allclose(got.astype(jnp.float32), ref.astype(jnp.float32),
                          atol=1e-2, rtol=1e-2)
        assert bool(ok), f"{name}: mismatch vs reference"

    # 1) General concat kernel (small class block for the tiny demo).
    prompts = prompt_learner_forward(token_prefix, ctx, token_suffix, block_cls=4)
    prompts = jax.block_until_ready(prompts)
    check("concat_kernel", prompts)

    # 2) Fast path: frozen base precomputed once; forward writes only ctx rows.
    base_prompts = build_base_prompts(token_prefix, token_suffix, n_ctx)
    prompts_fast = prompt_learner_forward_ctx_only(base_prompts, ctx, block_cls=4)
    prompts_fast = jax.block_until_ready(prompts_fast)
    check("ctx_only_kernel", prompts_fast)

    print("KERNEL_OK")
</pallas_src>

<mosaic_0001>
module attributes {stable_mosaic.version = 11 : i64} {
  func.func @_concat_kernel(%arg0: i32, %arg1: memref<4x1x128xbf16, #tpu.memory_space<vmem>>, %arg2: memref<4x128xf32, #tpu.memory_space<vmem>>, %arg3: memref<4x11x128xbf16, #tpu.memory_space<vmem>>, %arg4: memref<4x16x128xbf16, #tpu.memory_space<vmem>>) attributes {dimension_semantics = [#tpu.dimension_semantics<parallel>], iteration_bounds = array<i64: 3>, scalar_prefetch = 0 : i64, scratch_operands = 0 : i64, tpu.core_type = #tpu.core_type<tc>, window_params = [{transform_indices = @transform_0, window_bounds = array<i64: 4, 1, 128>}, {pipeline_mode = #tpu.pipeline_mode<synchronous>, transform_indices = @transform_1, window_bounds = array<i64: 4, 128>}, {transform_indices = @transform_2, window_bounds = array<i64: 4, 11, 128>}, {transform_indices = @transform_3, window_bounds = array<i64: 4, 16, 128>}]} {
    %c0 = arith.constant 0 : index
    %c0_0 = arith.constant 0 : index
    %0 = vector.load %arg2[%c0, %c0_0] : memref<4x128xf32, #tpu.memory_space<vmem>>, vector<4x128xf32>
    %1 = arith.truncf %0 : vector<4x128xf32> to vector<4x128xbf16>
    %2 = vector.shape_cast %1 : vector<4x128xbf16> to vector<1x4x128xbf16>
    %3 = vector.shape_cast %2 : vector<1x4x128xbf16> to vector<1x4x128xbf16>
    %4 = vector.broadcast %3 : vector<1x4x128xbf16> to vector<4x4x128xbf16>
    %c0_1 = arith.constant 0 : index
    %c0_2 = arith.constant 0 : index
    %c0_3 = arith.constant 0 : index
    %5 = vector.load %arg1[%c0_1, %c0_2, %c0_3] : memref<4x1x128xbf16, #tpu.memory_space<vmem>>, vector<4x1x128xbf16>
    %c0_4 = arith.constant 0 : index
    %c0_5 = arith.constant 0 : index
    %c0_6 = arith.constant 0 : index
    %6 = vector.load %arg3[%c0_4, %c0_5, %c0_6] : memref<4x11x128xbf16, #tpu.memory_space<vmem>>, vector<4x11x128xbf16>
    %7 = tpu.concatenate %5, %4, %6 in 1 : vector<4x1x128xbf16>, vector<4x4x128xbf16>, vector<4x11x128xbf16> -> vector<4x16x128xbf16>
    %c0_7 = arith.constant 0 : index
    %c0_8 = arith.constant 0 : index
    %c0_9 = arith.constant 0 : index
    %8 = vector.load %arg4[%c0_7, %c0_8, %c0_9] : memref<4x16x128xbf16, #tpu.memory_space<vmem>>, vector<4x16x128xbf16>
    tpu.vector_store %arg4[%c0_7, %c0_8, %c0_9], %7 {strides = array<i32>} : memref<4x16x128xbf16, #tpu.memory_space<vmem>>, vector<4x16x128xbf16>,
    return
  }
  func.func @transform_0(%arg0: i32) -> (i32, i32, i32) {
    %c0_i32 = arith.constant 0 : i32
    %c0_i32_0 = arith.constant 0 : i32
    %c0_i32_1 = arith.constant 0 : i32
    return %arg0, %c0_i32, %c0_i32_0 : i32, i32, i32
  }
  func.func @transform_1(%arg0: i32) -> (i32, i32) {
    %c0_i32 = arith.constant 0 : i32
    %c0_i32_0 = arith.constant 0 : i32
    %c0_i32_1 = arith.constant 0 : i32
    return %c0_i32, %c0_i32_0 : i32, i32
  }
  func.func @transform_2(%arg0: i32) -> (i32, i32, i32) {
    %c0_i32 = arith.constant 0 : i32
    %c0_i32_0 = arith.constant 0 : i32
    %c0_i32_1 = arith.constant 0 : i32
    return %arg0, %c0_i32, %c0_i32_0 : i32, i32, i32
  }
  func.func @transform_3(%arg0: i32) -> (i32, i32, i32) {
    %c0_i32 = arith.constant 0 : i32
    %c0_i32_0 = arith.constant 0 : i32
    %c0_i32_1 = arith.constant 0 : i32
    return %arg0, %c0_i32, %c0_i32_0 : i32, i32, i32
  }
}

</mosaic_0001>

<llo_original>
// kernel: tpu_custom_call.1
$region0: #{tpu_custom_call.1}
  #allocation0 [shape = 'u32[]', space=smem, size = 0x4, offset = 0x4, fixed_abs, tag = 'smem constant byte address 0x4 - core index']
  #allocation1 [shape = 'u32[144,128]{1,0:T(1,128)}', space=vmem, size = 0x12000, scoped, tag = 'internal scratch']
  %s0 = inlined_call_operand.vmem [shape: bf16[12,1,128], index: 0, kind: input, shape index: {}]
  %s1 = inlined_call_operand.vmem [shape: f32[4,128], index: 1, kind: input, shape index: {}]
  %s2 = inlined_call_operand.vmem [shape: bf16[12,11,128], index: 2, kind: input, shape index: {}]
  %s3 = inlined_call_operand.hbm [shape: bf16[12,16,128], index: 3, kind: output, shape index: {}]
  %s4 = sld [smem:[#allocation0]]
  $region45: #{tpu_custom_call.1} parent=0
    _
  %s6 = ssub.s32 1, %s4
  %s7 = scalar_select 0, %s6, %s4
  $region1: #{tpu_custom_call.1} parent=0
    #allocation2 [shape = 'u8[32768]{0}', space=vmem, size = 0x8000, scoped, tag = 'output window, operand 0']
    #allocation3 [shape = 's32[2]{0}', space=sflag, size = 0x8, scoped, tag = 'scoped memory for tpu_custom_call.1']
    %8 = vsyncpa [#allocation3], 0
    %s9 = scalar_lea.sflag [#allocation3], 1
    %10 = vsyncpa %s9, 0
    loop: start=0, step=1, limit=5
    $region2: #{tpu_custom_call.1} parent=1 // loop_pre_header
      _
    $region3: #{tpu_custom_call.1} parent=1 // loop_header
      %s12 = sphi 0, %s16
      %p13 = scmp.ge.s32.totalorder %s12, 5
      %s22 = sphi 0, %s24
      %s25 = sphi 0, %s22
      %s26 = sphi 0, %s25
      %s42 = sphi 0, %s26
      %s46 = sphi 0, %s46
      %s48 = sphi 0, %s46
      %s49 = sphi 0, %s48
      %s63 = sphi 0, %s49
      %s69 = sphi 0, %s71
      %s72 = sphi 0, %s69
      %s73 = sphi 0, %s72
      %s89 = sphi 0, %s73
      %s95 = sphi 0, %s97
      %s98 = sphi 0, %s95
      %s99 = sphi 0, %s98
      %s115 = sphi 0, %s99
    $region4: #{tpu_custom_call.1} parent=1 // loop_header_branch
      %15 = sbr.rel (%p13) target = $region8
    $region5: #{tpu_custom_call.1} parent=1 // loop_body
      %s17 = ssub.s32 %s12, 1
      %s18 = ssub.s32 %s12, 2
      %s19 = sadd.s32 %s12, 1
      %s20 = ssub.s32 %s12, %s19
      %p21 = scmp.eq.s32.totalorder %s20, 0
      %s23 = sadd.s32 %s22, 1
      %s24 = scalar_select %p21, %s22, %s23
      %p27 = pneg %p21
      %p28 = scmp.eq.s32.totalorder %s12, 2
      %p29 = por %p27, %p28
      %p30 = scmp.ne.s32.totalorder %s22, %s25
      %p31 = scmp.eq.s32.totalorder %s12, 0
      %p32 = por %p30, %p31
      %p33 = scmp.ne.s32.totalorder %s22, %s25
      %p34 = scmp.eq.s32.totalorder %s17, 2
      %p35 = por %p33, %p34
      %p36 = scmp.ne.s32.totalorder %s25, %s26
      %p37 = scmp.eq.s32.totalorder %s17, 0
      %p38 = por %p36, %p37
      %p39 = scmp.ne.s32.totalorder %s25, %s26
      %p40 = scmp.eq.s32.totalorder %s18, 2
      %p41 = por %p39, %p40
      %p43 = scmp.ne.s32.totalorder %s26, %s42
      %p44 = scmp.eq.s32.totalorder %s18, 0
      %p45 = por %p43, %p44
      %s47 = sadd.s32 %s46, 1
      %p50 = scmp.eq.s32.totalorder %s12, 2
      %p51 = scmp.ne.s32.totalorder %s46, %s48
      %p52 = scmp.eq.s32.totalorder %s12, 0
      %p53 = por %p51, %p52
      %p54 = scmp.ne.s32.totalorder %s46, %s48
      %p55 = scmp.eq.s32.totalorder %s17, 2
      %p56 = por %p54, %p55
      %p57 = scmp.ne.s32.totalorder %s48, %s49
      %p58 = scmp.eq.s32.totalorder %s17, 0
      %p59 = por %p57, %p58
      %p60 = scmp.ne.s32.totalorder %s48, %s49
      %p61 = scmp.eq.s32.totalorder %s18, 2
      %p62 = por %p60, %p61
      %p64 = scmp.ne.s32.totalorder %s49, %s63
      %p65 = scmp.eq.s32.totalorder %s18, 0
      %p66 = por %p64, %p65
      %s67 = ssub.s32 %s12, %s19
      %p68 = scmp.eq.s32.totalorder %s67, 0
      %s70 = sadd.s32 %s69, 1
      %s71 = scalar_select %p68, %s69, %s70
      %p74 = pneg %p68
      %p75 = scmp.eq.s32.totalorder %s12, 2
      %p76 = por %p74, %p75
      %p77 = scmp.ne.s32.totalorder %s69, %s72
      %p78 = scmp.eq.s32.totalorder %s12, 0
      %p79 = por %p77, %p78
      %p80 = scmp.ne.s32.totalorder %s69, %s72
      %p81 = scmp.eq.s32.totalorder %s17, 2
      %p82 = por %p80, %p81
      %p83 = scmp.ne.s32.totalorder %s72, %s73
      %p84 = scmp.eq.s32.totalorder %s17, 0
      %p85 = por %p83, %p84
      %p86 = scmp.ne.s32.totalorder %s72, %s73
      %p87 = scmp.eq.s32.totalorder %s18, 2
      %p88 = por %p86, %p87
      %p90 = scmp.ne.s32.totalorder %s73, %s89
      %p91 = scmp.eq.s32.totalorder %s18, 0
      %p92 = por %p90, %p91
      %s93 = ssub.s32 %s12, %s19
      %p94 = scmp.eq.s32.totalorder %s93, 0
      %s96 = sadd.s32 %s95, 1
      %s97 = scalar_select %p94, %s95, %s96
      %p100 = pneg %p94
      %p101 = scmp.eq.s32.totalorder %s12, 2
      %p102 = por %p100, %p101
      %p103 = scmp.ne.s32.totalorder %s95, %s98
      %p104 = scmp.eq.s32.totalorder %s12, 0
      %p105 = por %p103, %p104
      %p106 = scmp.ne.s32.totalorder %s95, %s98
      %p107 = scmp.eq.s32.totalorder %s17, 2
      %p108 = por %p106, %p107
      %p109 = scmp.ne.s32.totalorder %s98, %s99
      %p110 = scmp.eq.s32.totalorder %s17, 0
      %p111 = por %p109, %p110
      %p112 = scmp.ne.s32.totalorder %s98, %s99
      %p113 = scmp.eq.s32.totalorder %s18, 2
      %p114 = por %p112, %p113
      %p116 = scmp.ne.s32.totalorder %s99, %s115
      %p117 = scmp.eq.s32.totalorder %s18, 0
      %p118 = por %p116, %p117
      %p119 = scmp.le.s32.totalorder 1, %s12
      %p120 = scmp.lt.s32.totalorder %s12, 4
      %p121 = pnand %p119, %p120
      %p122 = pneg %p121
      // Predicated region
      $region9: #{tpu_custom_call.1} parent=5 // pred_check
        _
      $region10: #{tpu_custom_call.1} parent=5 // pred_check_branch
        %124 = sbr.rel (%p121) target = $region12
      $region11: #{tpu_custom_call.1} parent=5 // pred_region
        %s125 = ssub.s32 %s12, 1
        // Predicated region
        $region13: #{tpu_custom_call.1} parent=11 // pred_check
          %p126 = pneg %p59
        $region14: #{tpu_custom_call.1} parent=11 // pred_check_branch
          %128 = sbr.rel (%p126) target = $region16
        $region15: #{tpu_custom_call.1} parent=11 // pred_region
          _
        $region16: #{tpu_custom_call.1} parent=11 // pred_fallthru
          _
      $region12: #{tpu_custom_call.1} parent=5 // pred_fallthru
        _
      %p129 = scmp.lt.s32.totalorder %s12, 3
      // Predicated region
      $region17: #{tpu_custom_call.1} parent=5 // pred_check
        %p130 = pneg %p129
      $region18: #{tpu_custom_call.1} parent=5 // pred_check_branch
        %132 = sbr.rel (%p130) target = $region20
      $region19: #{tpu_custom_call.1} parent=5 // pred_region
        // Predicated region
        $region21: #{tpu_custom_call.1} parent=19 // pred_check
          %p133 = pneg %p32
        $region22: #{tpu_custom_call.1} parent=19 // pred_check_branch
          %135 = sbr.rel (%p133) target = $region24
        $region23: #{tpu_custom_call.1} parent=19 // pred_region
          %s136 = smul.u32 4, %s12
          %p137 = scmp.lt.s32.totalorder %s136, 11
          %s138 = scalar_select %p137, %s136, 11
          %s139 = scalar_lea.vmem %s0, %s138
          %s140 = smul.u32 4, %s12
        $region24: #{tpu_custom_call.1} parent=19 // pred_fallthru
          _
        // Predicated region
        $region25: #{tpu_custom_call.1} parent=19 // pred_check
          %p141 = pneg %p79
        $region26: #{tpu_custom_call.1} parent=19 // pred_check_branch
          %143 = sbr.rel (%p141) target = $region28
        $region27: #{tpu_custom_call.1} parent=19 // pred_region
          %s144 = smul.u32 4, %s12
          %p145 = scmp.lt.s32.totalorder %s144, 11
          %s146 = scalar_select %p145, %s144, 11
          %s147 = smul.addr %s146, 2
          %s148 = smul.addr %s147, 4
          %s149 = scalar_lea.vmem %s2, %s148
          %s150 = smul.u32 4, %s12
        $region28: #{tpu_custom_call.1} parent=19 // pred_fallthru
          _
      $region20: #{tpu_custom_call.1} parent=5 // pred_fallthru
        _
      %p151 = scmp.le.s32.totalorder 1, %s12
      %p152 = scmp.lt.s32.totalorder %s12, 4
      %p153 = pnand %p151, %p152
      %p154 = pneg %p153
      // Predicated region
      $region29: #{tpu_custom_call.1} parent=5 // pred_check
        _
      $region30: #{tpu_custom_call.1} parent=5 // pred_check_branch
        %156 = sbr.rel (%p153) target = $region32
      $region31: #{tpu_custom_call.1} parent=5 // pred_region
        %s157 = ssub.s32 %s12, 1
        %s158 = smul.u32 4, %s17
        %p159 = scmp.lt.s32.totalorder %s158, 11
        %s160 = scalar_select %p159, %s158, 11
        %s161 = scalar_lea.vmem %s0, %s160
        %p162 = pneg %p38
        %p163 = pneg %p35
        %p164 = pneg %p59
        %p165 = pneg %p56
        %s166 = smul.u32 4, %s17
        %p167 = scmp.lt.s32.totalorder %s166, 11
        %s168 = scalar_select %p167, %s166, 11
        %s169 = smul.addr %s168, 2
        %s170 = smul.addr %s169, 4
        %s171 = scalar_lea.vmem %s2, %s170
        %p172 = pneg %p85
        %p173 = pneg %p82
        %p174 = pneg %p111
        %p175 = pneg %p108
        %s176 = sand.u32 %s98, 1
        %s177 = scalar_lea.sflag [#allocation3], %s176
        %s178 = sand.u32 %s98, 1
        %s179 = smul.addr %s178, 32
        %s180 = scalar_lea.vmem [#allocation2], %s179
        %s181 = smul.u32 4, %s17
        %p182 = scmp.lt.s32.totalorder %s181, 11
        %s183 = scalar_select %p182, %s181, 11
        %s184 = scalar_lea.vmem %s0, %s183
        %s185 = smul.u32 4, %s17
        %s186 = smul.u32 4, %s17
        %p187 = scmp.lt.s32.totalorder %s186, 11
        %s188 = scalar_select %p187, %s186, 11
        %s189 = smul.addr %s188, 2
        %s190 = smul.addr %s189, 4
        %s191 = scalar_lea.vmem %s2, %s190
        %s192 = smul.u32 4, %s17
        %s193 = smul.u32 4, %s17
        %v194 = vld [vmem:[%s1] sm:$0xf]
        %v195 = vpack.c.bf16 %v194, %v194
        %v196 = vld [vmem:[%s184] sm:$0x1]
        %v197 = vld [vmem:[%s184 + $0x1] sm:$0x1]
        %v198 = vld [vmem:[%s184 + $0x2] sm:$0x1]
        %v199 = vld [vmem:[%s184 + $0x3] sm:$0x1]
        %v200 = vld [vmem:[%s191] sm:$0xf]
        %v201 = vld [vmem:[%s191 + $0x4] sm:$0x3]
        %v202 = vld [vmem:[%s191 + $0x8] sm:$0xf]
        %v203 = vld [vmem:[%s191 + $0xc] sm:$0x3]
        %v204 = vld [vmem:[%s191 + $0x10] sm:$0xf]
        %v205 = vld [vmem:[%s191 + $0x14] sm:$0x3]
        %v206 = vld [vmem:[%s191 + $0x18] sm:$0xf]
        %v207 = vld [vmem:[%s191 + $0x1c] sm:$0x3]
        %v209 = vshrl.u32 %v195, 16
        %v211 = vrot.slane %v209, 7
        %v212 = vshll.u32 %v195, 16
        %v214 = vor.u32 %v211, %v212
        %v224 = vunpack.c.l.b16 %v200
        %v225 = vunpack.c.l.b16 %v201
        %v226 = vunpack.c.l.b16 %v202
        %v227 = vunpack.c.l.b16 %v203
        %v228 = vunpack.c.l.b16 %v204
        %v229 = vunpack.c.l.b16 %v205
        %v230 = vunpack.c.l.b16 %v206
        %v231 = vunpack.c.l.b16 %v207
        %v232 = vpack.c.b16 %v225, %v224
        %v233 = vpack.c.b16 %v227, %v226
        %v234 = vpack.c.b16 %v229, %v228
        %v235 = vpack.c.b16 %v231, %v230
        %v237 = vshrl.u32 %v232, 16
        %v239 = vrot.slane %v237, 5
        %v240 = vshll.u32 %v232, 16
        %v242 = vrot.slane %v240, 6
        %v243 = vor.u32 %v239, %v242
        %v245 = vshrl.u32 %v233, 16
        %v247 = vrot.slane %v245, 5
        %v248 = vshll.u32 %v233, 16
        %v250 = vrot.slane %v248, 6
        %v251 = vor.u32 %v247, %v250
        %v253 = vshrl.u32 %v234, 16
        %v255 = vrot.slane %v253, 5
        %v256 = vshll.u32 %v234, 16
        %v258 = vrot.slane %v256, 6
        %v259 = vor.u32 %v255, %v258
        %v261 = vshrl.u32 %v235, 16
        %v263 = vrot.slane %v261, 5
        %v264 = vshll.u32 %v235, 16
        %v266 = vrot.slane %v264, 6
        %v267 = vor.u32 %v263, %v266
        %vm272 = vcmask 1040384
        %vm273 = vsmask.f32 256
        %vm274 = vmand %vm272, %vm273
        %v275 = vsel %vm274, %v196, %v214
        %v276 = vsel %vm274, %v197, %v214
        %v277 = vsel %vm274, %v198, %v214
        %v278 = vsel %vm274, %v199, %v214
        %vm279 = vcmask 1042432
        %vm280 = vsmask.f32 2304
        %vm281 = vmand %vm279, %vm280
        %v282 = vsel %vm281, %v275, %v243
        %v283 = vsel %vm281, %v276, %v251
        %v284 = vsel %vm281, %v277, %v259
        %v285 = vsel %vm281, %v278, %v267
        %v290 = vunpack.c.l.b16 %v282
        %v291 = vunpack.c.h.b16 %v282
        %v292 = vunpack.c.l.b16 %v283
        %v293 = vunpack.c.h.b16 %v283
        %v294 = vunpack.c.l.b16 %v284
        %v295 = vunpack.c.h.b16 %v284
        %v296 = vunpack.c.l.b16 %v285
        %v297 = vunpack.c.h.b16 %v285
        %v298 = vpack.c.b16 %v290, %v290
        %v299 = vpack.c.b16 %v291, %v291
        %v300 = vpack.c.b16 %v292, %v292
        %v301 = vpack.c.b16 %v293, %v293
        %v302 = vpack.c.b16 %v294, %v294
        %v303 = vpack.c.b16 %v295, %v295
        %v304 = vpack.c.b16 %v296, %v296
        %v305 = vpack.c.b16 %v297, %v297
        %314 = vst [vmem:[%s180] sm:$0xf] %v298
        %315 = vst [vmem:[%s180 + $0x4] sm:$0xf] %v299
        %316 = vst [vmem:[%s180 + $0x8] sm:$0xf] %v300
        %317 = vst [vmem:[%s180 + $0xc] sm:$0xf] %v301
        %318 = vst [vmem:[%s180 + $0x10] sm:$0xf] %v302
        %319 = vst [vmem:[%s180 + $0x14] sm:$0xf] %v303
        %320 = vst [vmem:[%s180 + $0x18] sm:$0xf] %v304
        %321 = vst [vmem:[%s180 + $0x1c] sm:$0xf] %v305
        %s322 = sand.u32 %s98, 1
        %s323 = scalar_lea.sflag [#allocation3], %s322
        %s324 = sand.u32 %s98, 1
        %s325 = smul.addr %s324, 32
        %s326 = scalar_lea.vmem [#allocation2], %s325
        // Predicated region
        $region33: #{tpu_custom_call.1} parent=31 // pred_check
          %p327 = pneg %p108
        $region34: #{tpu_custom_call.1} parent=31 // pred_check_branch
          %329 = sbr.rel (%p327) target = $region36
        $region35: #{tpu_custom_call.1} parent=31 // pred_region
          %s330 = smul.u32 4, %s17
          %s332 = ssub.s32 512, 512
          %333 = vsyncadd %s323, %s332
          %s334 = smul.addr %s330, 2
          %s335 = smul.addr %s334, 64
          %s336 = scalar_lea.hbm %s3, %s335
          %s337 = sshll.u32 %s326, 4
          %s338 = int_to_ptr.vmem [resolvable:$true] %s337
          %343 = dma.vmem_to_hbm [thread:$0]  %s338, 512, %s336, %s323, 64, 64, 4
        $region36: #{tpu_custom_call.1} parent=31 // pred_fallthru
          _
      $region32: #{tpu_custom_call.1} parent=5 // pred_fallthru
        _
      %p344 = scmp.le.s32.totalorder 2, %s12
      // Predicated region
      $region37: #{tpu_custom_call.1} parent=5 // pred_check
        %p345 = pneg %p344
      $region38: #{tpu_custom_call.1} parent=5 // pred_check_branch
        %347 = sbr.rel (%p345) target = $region40
      $region39: #{tpu_custom_call.1} parent=5 // pred_region
        %s348 = ssub.s32 %s12, 2
        // Predicated region
        $region41: #{tpu_custom_call.1} parent=39 // pred_check
          %p349 = pneg %p114
        $region42: #{tpu_custom_call.1} parent=39 // pred_check_branch
          %351 = sbr.rel (%p349) target = $region44
        $region43: #{tpu_custom_call.1} parent=39 // pred_region
          %s352 = sand.u32 %s99, 1
          %s353 = scalar_lea.sflag [#allocation3], %s352
          %s354 = sand.u32 %s99, 1
          %s355 = smul.addr %s354, 32
          %s356 = scalar_lea.vmem [#allocation2], %s355
          %357 = dma.done %s353, 512
        $region44: #{tpu_custom_call.1} parent=39 // pred_fallthru
          _
      $region40: #{tpu_custom_call.1} parent=5 // pred_fallthru
        _
    $region6: #{tpu_custom_call.1} parent=1 // loop_footer
      %s16 = sadd.s32 1, %s12
    $region7: #{tpu_custom_call.1} parent=1 // loop_footer_branch
      %11 = sbr.rel target = $region3
    $region8: #{tpu_custom_call.1} parent=1 // loop_exit
      _
    %358 = vsyncpa [#allocation3], 1
    %s359 = scalar_lea.sflag [#allocation3], 1
    %360 = vsyncpa %s359, 1

</llo_original>
